<compile_context>
chip_gen: v5e
topology: v5e:2x2
jax: 0.10.0
libtpu: 0.0.40
codegen_flags: <defaults>
</compile_context>

<pallas_src>
import functools

import jax
import jax.numpy as jnp
from jax.experimental import pallas as pl
from jax.experimental.pallas import tpu as pltpu

LANE = 128      # vreg lane width
SUBLANE = 8     # vreg sublane width (f32)


def _round_up(n, m):
    return ((n + m - 1) // m) * m


def default_act_dtype():
    """bf16 tanh/exp on v6e/v7x (bf16 VPU/EUP), f32 on v5e and older."""
    try:
        kind = jax.devices()[0].device_kind.lower()
    except Exception:
        return jnp.float32
    for tag in ("v2", "v3", "v4", "v5"):
        if tag in kind:
            return jnp.float32
    return jnp.bfloat16


def actor_kernel(x_ref, w1_ref, b1_ref, w2_ref, b2_ref, w3_ref, b3_ref, o_ref,
                 *, act_dtype):
    """One (TB, S) batch tile of the 3-layer MLP + softmax.

    Weights arrive pre-padded on the hidden dim only (zero pad rows/cols are
    algebraically inert).  Logits stay f32 (required for the stable softmax);
    tanh runs in `act_dtype` (bf16 on v6e/v7x, f32 on v5e).
    """
    w1 = w1_ref[...]
    mxu_dtype = w1.dtype                      # bf16 (or f32) MXU operand dtype
    x = x_ref[...].astype(mxu_dtype)

    # Layer 1: Linear (f32 accumulate, f32 bias) + Tanh in act_dtype.
    z1 = jnp.dot(x, w1, preferred_element_type=jnp.float32) + b1_ref[...]
    h1 = jnp.tanh(z1.astype(act_dtype))

    # Layer 2: Linear + Tanh.
    z2 = jnp.dot(h1.astype(mxu_dtype), w2_ref[...],
                 preferred_element_type=jnp.float32) + b2_ref[...]
    h2 = jnp.tanh(z2.astype(act_dtype))

    # Layer 3: Linear -> logits (f32; action dim is unpadded).
    logits = (jnp.dot(h2.astype(mxu_dtype), w3_ref[...],
                      preferred_element_type=jnp.float32) + b3_ref[...])

    # Numerically stable softmax over the (unpadded) action dim.
    m = jnp.max(logits, axis=-1, keepdims=True)
    e = jnp.exp(logits - m)
    inv = pl.reciprocal(jnp.sum(e, axis=-1, keepdims=True), approx=False)
    o_ref[...] = (e * inv).astype(o_ref.dtype)


def prepare_actor_params(w1, b1, w2, b2, w3, b3, *, mxu_dtype=jnp.bfloat16):
    """One-time padding/cast of the resident weights (hoisted out of forward).

    Only the hidden dim is padded to 128 lanes (zero pad -> tanh(0)=0 ->
    zero rows into the next matmul: semantics preserved).  The state and
    action dims stay unpadded so streamed/stored bytes are minimal.
    """
    S, H = w1.shape
    A = w3.shape[1]
    Hp = _round_up(H, LANE)
    f32 = jnp.float32

    w1p = jnp.zeros((S, Hp), mxu_dtype).at[:, :H].set(w1.astype(mxu_dtype))
    b1p = jnp.zeros((1, Hp), f32).at[:, :H].set(jnp.reshape(b1, (1, -1)).astype(f32))
    w2p = jnp.zeros((Hp, Hp), mxu_dtype).at[:H, :H].set(w2.astype(mxu_dtype))
    b2p = jnp.zeros((1, Hp), f32).at[:, :H].set(jnp.reshape(b2, (1, -1)).astype(f32))
    w3p = jnp.zeros((Hp, A), mxu_dtype).at[:H, :].set(w3.astype(mxu_dtype))
    b3p = jnp.reshape(b3, (1, A)).astype(f32)
    return w1p, b1p, w2p, b2p, w3p, b3p


@functools.partial(jax.jit, static_argnames=("block_batch", "act_dtype"))
def actor_forward(x, w1p, b1p, w2p, b2p, w3p, b3p, *,
                  block_batch=512, act_dtype=jnp.float32):
    """Actor forward. x:(B,S) -> probs:(B,A) f32. Params must be pre-padded."""
    B, S = x.shape
    Hp = w1p.shape[1]
    A = w3p.shape[1]
    assert w1p.shape[0] == S and w2p.shape == (Hp, Hp) and w3p.shape[0] == Hp

    # Batch tile: multiple of 8, as large as block_batch allows, but capped so
    # the grid has >= 2 steps when possible (v7x dual-TC sharding of "parallel").
    Bp0 = _round_up(B, SUBLANE)
    tb_cap = _round_up(-(-Bp0 // 2), SUBLANE) if Bp0 > SUBLANE else SUBLANE
    TB = max(SUBLANE, min(_round_up(block_batch, SUBLANE), tb_cap))
    Bp = _round_up(B, TB)

    xp = x.astype(jnp.float32)
    if Bp != B:                         # pad batch rows only (no lane padding)
        xp = jnp.pad(xp, ((0, Bp - B), (0, 0)))

    grid = (Bp // TB,)

    # Advisory cost estimate so XLA can overlap this call with surrounding ops.
    mxu_itemsize = jnp.dtype(w1p.dtype).itemsize
    weight_bytes = ((w1p.size + w2p.size + w3p.size) * mxu_itemsize
                    + (b1p.size + b2p.size + b3p.size) * 4)
    cost = pl.CostEstimate(
        flops=2 * Bp * (S * Hp + Hp * Hp + Hp * A),
        transcendentals=Bp * (2 * Hp + A),
        bytes_accessed=Bp * S * 4 + Bp * A * 4 + weight_bytes,
    )

    def pinned(shape):
        # Whole array as one block, same block every grid step -> resident in
        # VMEM across the batch loop.  Single-buffer it only once weights are
        # big enough for double-buffering to matter on v7x's 64 MiB VMEM.
        if Hp >= 2048:
            return pl.BlockSpec(shape, lambda i: (0, 0),
                                pipeline_mode=pl.Buffered(1))
        return pl.BlockSpec(shape, lambda i: (0, 0))

    compiler_kwargs = dict(dimension_semantics=("parallel",))
    # Raise the scoped VMEM limit only if the resident weights + streamed tiles
    # could exceed v5e's 16 MiB default (no-op at these sizes).
    vmem_est = 2 * (weight_bytes + TB * (S + A) * 4) + 8 * TB * Hp * 4
    if vmem_est > (16 << 20):
        compiler_kwargs["vmem_limit_bytes"] = min(int(vmem_est), 60 << 20)

    kernel = functools.partial(actor_kernel, act_dtype=act_dtype)

    out = pl.pallas_call(
        kernel,
        out_shape=jax.ShapeDtypeStruct((Bp, A), jnp.float32),
        grid=grid,
        in_specs=[
            pl.BlockSpec((TB, S), lambda i: (i, 0)),    # streamed activations
            pinned((S, Hp)), pinned((1, Hp)),           # layer 1 (resident)
            pinned((Hp, Hp)), pinned((1, Hp)),          # layer 2 (resident)
            pinned((Hp, A)), pinned((1, A)),            # layer 3 (resident)
        ],
        out_specs=pl.BlockSpec((TB, A), lambda i: (i, 0)),
        compiler_params=pltpu.CompilerParams(**compiler_kwargs),
        cost_estimate=cost,
    )(xp, w1p, b1p, w2p, b2p, w3p, b3p)

    if Bp != B:
        out = out[:B]
    return out


def init_actor_params(key, state_size, action_size, hidsize):
    """PyTorch-style uniform(-1/sqrt(fan_in)) init; weights stored (in, out)."""
    ks = jax.random.split(key, 6)

    def linear(kw, kb, fan_in, fan_out):
        bound = 1.0 / jnp.sqrt(jnp.asarray(fan_in, jnp.float32))
        w = jax.random.uniform(kw, (fan_in, fan_out), jnp.float32, -bound, bound)
        b = jax.random.uniform(kb, (1, fan_out), jnp.float32, -bound, bound)
        return w, b

    w1, b1 = linear(ks[0], ks[1], state_size, hidsize)
    w2, b2 = linear(ks[2], ks[3], hidsize, hidsize)
    w3, b3 = linear(ks[4], ks[5], hidsize, action_size)
    return w1, b1, w2, b2, w3, b3


if __name__ == "__main__":
    # Small shapes consistent with the module; batch chosen so the batch grid
    # gets 2 steps (resident weights, streamed activation tiles, TB=32).
    batch = 64
    state_size = 16
    action_size = 8
    hidsize = 32

    key = jax.random.PRNGKey(0)
    k_x, k_p = jax.random.split(key)
    x = jax.random.normal(k_x, (batch, state_size), jnp.float32)
    params = init_actor_params(k_p, state_size, action_size, hidsize)

    # One-time pad/cast of weights (outside the per-call forward).
    padded = prepare_actor_params(*params, mxu_dtype=jnp.bfloat16)
    padded = jax.block_until_ready(padded)

    probs = actor_forward(x, *padded, block_batch=512,
                          act_dtype=default_act_dtype())
    probs = jax.block_until_ready(probs)

    # Sanity: valid categorical distribution per row (exact reciprocal -> row
    # sums match 1 to f32 rounding).
    assert probs.shape == (batch, action_size)
    row_sums = jnp.sum(probs, axis=-1)
    assert bool(jnp.all(jnp.abs(row_sums - 1.0) < 1e-3)), row_sums

    # Cross-check against the pure-JAX f32 reference (bf16 MXU operands and
    # possibly bf16 tanh -> loosened absolute tolerance on probabilities).
    w1, b1, w2, b2, w3, b3 = params
    h1 = jnp.tanh(x @ w1 + b1)
    h2 = jnp.tanh(h1 @ w2 + b2)
    ref = jax.nn.softmax(h2 @ w3 + b3, axis=-1)
    err = jnp.max(jnp.abs(probs - ref))
    assert bool(err < 5e-2), err

    print("KERNEL_OK")
</pallas_src>

<mosaic_0001>
module attributes {stable_mosaic.version = 11 : i64} {
  func.func @actor_kernel(%arg0: i32, %arg1: memref<32x16xf32, #tpu.memory_space<vmem>>, %arg2: memref<16x128xbf16, #tpu.memory_space<vmem>>, %arg3: memref<1x128xf32, #tpu.memory_space<vmem>>, %arg4: memref<128x128xbf16, #tpu.memory_space<vmem>>, %arg5: memref<1x128xf32, #tpu.memory_space<vmem>>, %arg6: memref<128x8xbf16, #tpu.memory_space<vmem>>, %arg7: memref<1x8xf32, #tpu.memory_space<vmem>>, %arg8: memref<32x8xf32, #tpu.memory_space<vmem>>) attributes {dimension_semantics = [#tpu.dimension_semantics<parallel>], iteration_bounds = array<i64: 2>, scalar_prefetch = 0 : i64, scratch_operands = 0 : i64, tpu.core_type = #tpu.core_type<tc>, window_params = [{transform_indices = @transform_0, window_bounds = array<i64: 32, 16>}, {pipeline_mode = #tpu.pipeline_mode<synchronous>, transform_indices = @transform_1, window_bounds = array<i64: 16, 128>}, {pipeline_mode = #tpu.pipeline_mode<synchronous>, transform_indices = @transform_2, window_bounds = array<i64: 1, 128>}, {pipeline_mode = #tpu.pipeline_mode<synchronous>, transform_indices = @transform_3, window_bounds = array<i64: 128, 128>}, {pipeline_mode = #tpu.pipeline_mode<synchronous>, transform_indices = @transform_4, window_bounds = array<i64: 1, 128>}, {pipeline_mode = #tpu.pipeline_mode<synchronous>, transform_indices = @transform_5, window_bounds = array<i64: 128, 8>}, {pipeline_mode = #tpu.pipeline_mode<synchronous>, transform_indices = @transform_6, window_bounds = array<i64: 1, 8>}, {transform_indices = @transform_7, window_bounds = array<i64: 32, 8>}]} {
    %c0 = arith.constant 0 : index
    %c0_0 = arith.constant 0 : index
    %0 = vector.load %arg2[%c0, %c0_0] : memref<16x128xbf16, #tpu.memory_space<vmem>>, vector<16x128xbf16>
    %c0_1 = arith.constant 0 : index
    %c0_2 = arith.constant 0 : index
    %1 = vector.load %arg1[%c0_1, %c0_2] : memref<32x16xf32, #tpu.memory_space<vmem>>, vector<32x16xf32>
    %2 = arith.truncf %1 : vector<32x16xf32> to vector<32x16xbf16>
    %cst = arith.constant dense<0.000000e+00> : vector<32x128xf32>
    %3 = tpu.matmul %2, %0, %cst {dimension_numbers = #tpu.dot_dimension_numbers<[1], [0], [0], [1], [0, 0, 1, 1], [], []>} : vector<32x16xbf16>, vector<16x128xbf16>, vector<32x128xf32> -> vector<32x128xf32>
    %c0_3 = arith.constant 0 : index
    %c0_4 = arith.constant 0 : index
    %4 = vector.load %arg3[%c0_3, %c0_4] : memref<1x128xf32, #tpu.memory_space<vmem>>, vector<1x128xf32>
    %5 = vector.broadcast %4 : vector<1x128xf32> to vector<32x128xf32>
    %6 = arith.addf %3, %5 : vector<32x128xf32>
    %7 = arith.truncf %6 : vector<32x128xf32> to vector<32x128xbf16>
    %8 = math.tanh %7 : vector<32x128xbf16>
    %c0_5 = arith.constant 0 : index
    %c0_6 = arith.constant 0 : index
    %9 = vector.load %arg4[%c0_5, %c0_6] : memref<128x128xbf16, #tpu.memory_space<vmem>>, vector<128x128xbf16>
    %cst_7 = arith.constant dense<0.000000e+00> : vector<32x128xf32>
    %10 = tpu.matmul %8, %9, %cst_7 {dimension_numbers = #tpu.dot_dimension_numbers<[1], [0], [0], [1], [0, 0, 1, 1], [], []>} : vector<32x128xbf16>, vector<128x128xbf16>, vector<32x128xf32> -> vector<32x128xf32>
    %c0_8 = arith.constant 0 : index
    %c0_9 = arith.constant 0 : index
    %11 = vector.load %arg5[%c0_8, %c0_9] : memref<1x128xf32, #tpu.memory_space<vmem>>, vector<1x128xf32>
    %12 = vector.broadcast %11 : vector<1x128xf32> to vector<32x128xf32>
    %13 = arith.addf %10, %12 : vector<32x128xf32>
    %14 = arith.truncf %13 : vector<32x128xf32> to vector<32x128xbf16>
    %15 = math.tanh %14 : vector<32x128xbf16>
    %c0_10 = arith.constant 0 : index
    %c0_11 = arith.constant 0 : index
    %16 = vector.load %arg6[%c0_10, %c0_11] : memref<128x8xbf16, #tpu.memory_space<vmem>>, vector<128x8xbf16>
    %cst_12 = arith.constant dense<0.000000e+00> : vector<32x8xf32>
    %17 = tpu.matmul %15, %16, %cst_12 {dimension_numbers = #tpu.dot_dimension_numbers<[1], [0], [0], [1], [0, 0, 1, 1], [], []>} : vector<32x128xbf16>, vector<128x8xbf16>, vector<32x8xf32> -> vector<32x8xf32>
    %c0_13 = arith.constant 0 : index
    %c0_14 = arith.constant 0 : index
    %18 = vector.load %arg7[%c0_13, %c0_14] : memref<1x8xf32, #tpu.memory_space<vmem>>, vector<1x8xf32>
    %19 = vector.broadcast %18 : vector<1x8xf32> to vector<32x8xf32>
    %20 = arith.addf %17, %19 : vector<32x8xf32>
    %cst_15 = arith.constant dense<0xFF800000> : vector<32xf32>
    %21 = vector.multi_reduction <maximumf>, %20, %cst_15 [1] : vector<32x8xf32> to vector<32xf32>
    %22 = vector.shape_cast %21 : vector<32xf32> to vector<32x1xf32>
    %23 = vector.broadcast %22 : vector<32x1xf32> to vector<32x8xf32>
    %24 = arith.subf %20, %23 : vector<32x8xf32>
    %25 = math.exp %24 : vector<32x8xf32>
    %cst_16 = arith.constant dense<0.000000e+00> : vector<32xf32>
    %26 = vector.multi_reduction <add>, %25, %cst_16 [1] : vector<32x8xf32> to vector<32xf32>
    %27 = vector.shape_cast %26 : vector<32xf32> to vector<32x1xf32>
    %28 = tpu.reciprocal %27 : vector<32x1xf32> -> vector<32x1xf32>
    %29 = vector.broadcast %28 : vector<32x1xf32> to vector<32x8xf32>
    %30 = arith.mulf %25, %29 : vector<32x8xf32>
    %c0_17 = arith.constant 0 : index
    %c0_18 = arith.constant 0 : index
    %31 = vector.load %arg8[%c0_17, %c0_18] : memref<32x8xf32, #tpu.memory_space<vmem>>, vector<32x8xf32>
    tpu.vector_store %arg8[%c0_17, %c0_18], %30 {strides = array<i32>} : memref<32x8xf32, #tpu.memory_space<vmem>>, vector<32x8xf32>,
    return
  }
  func.func @transform_0(%arg0: i32) -> (i32, i32) {
    %c0_i32 = arith.constant 0 : i32
    %c0_i32_0 = arith.constant 0 : i32
    return %arg0, %c0_i32 : i32, i32
  }
  func.func @transform_1(%arg0: i32) -> (i32, i32) {
    %c0_i32 = arith.constant 0 : i32
    %c0_i32_0 = arith.constant 0 : i32
    %c0_i32_1 = arith.constant 0 : i32
    return %c0_i32, %c0_i32_0 : i32, i32
  }
  func.func @transform_2(%arg0: i32) -> (i32, i32) {
    %c0_i32 = arith.constant 0 : i32
    %c0_i32_0 = arith.constant 0 : i32
    %c0_i32_1 = arith.constant 0 : i32
    return %c0_i32, %c0_i32_0 : i32, i32
  }
  func.func @transform_3(%arg0: i32) -> (i32, i32) {
    %c0_i32 = arith.constant 0 : i32
    %c0_i32_0 = arith.constant 0 : i32
    %c0_i32_1 = arith.constant 0 : i32
    return %c0_i32, %c0_i32_0 : i32, i32
  }
  func.func @transform_4(%arg0: i32) -> (i32, i32) {
    %c0_i32 = arith.constant 0 : i32
    %c0_i32_0 = arith.constant 0 : i32
    %c0_i32_1 = arith.constant 0 : i32
    return %c0_i32, %c0_i32_0 : i32, i32
  }
  func.func @transform_5(%arg0: i32) -> (i32, i32) {
    %c0_i32 = arith.constant 0 : i32
    %c0_i32_0 = arith.constant 0 : i32
    %c0_i32_1 = arith.constant 0 : i32
    return %c0_i32, %c0_i32_0 : i32, i32
  }
  func.func @transform_6(%arg0: i32) -> (i32, i32) {
    %c0_i32 = arith.constant 0 : i32
    %c0_i32_0 = arith.constant 0 : i32
    %c0_i32_1 = arith.constant 0 : i32
    return %c0_i32, %c0_i32_0 : i32, i32
  }
  func.func @transform_7(%arg0: i32) -> (i32, i32) {
    %c0_i32 = arith.constant 0 : i32
    %c0_i32_0 = arith.constant 0 : i32
    return %arg0, %c0_i32 : i32, i32
  }
}

</mosaic_0001>

<llo_original>
// kernel: actor_forward.1
$region0: #{actor_forward.1}
  #allocation0 [shape = 'u32[]', space=smem, size = 0x4, offset = 0x4, fixed_abs, tag = 'smem constant byte address 0x4 - core index']
  #allocation1 [shape = 'u32[72,128]{1,0:T(1,128)}', space=vmem, size = 0x9000, scoped, tag = 'internal scratch']
  %s0 = inlined_call_operand.vmem [shape: f32[64,16], index: 0, kind: input, shape index: {}]
  %s1 = inlined_call_operand.vmem [shape: bf16[16,128], index: 1, kind: input, shape index: {}]
  %s2 = inlined_call_operand.vmem [shape: f32[1,128], index: 2, kind: input, shape index: {}]
  %s3 = inlined_call_operand.vmem [shape: bf16[128,128], index: 3, kind: input, shape index: {}]
  %s4 = inlined_call_operand.vmem [shape: f32[1,128], index: 4, kind: input, shape index: {}]
  %s5 = inlined_call_operand.vmem [shape: bf16[128,8], index: 5, kind: input, shape index: {}]
  %s6 = inlined_call_operand.vmem [shape: f32[1,8], index: 6, kind: input, shape index: {}]
  %s7 = inlined_call_operand.vmem [shape: f32[64,8], index: 7, kind: output, shape index: {}]
  %s8 = sld [smem:[#allocation0]]
  $region61: #{actor_forward.1} parent=0
    _
  %s10 = ssub.s32 1, %s8
  %s11 = scalar_select 0, %s10, %s8
  loop: start=0, step=1, limit=4
  $region2: #{actor_forward.1} parent=0 // loop_pre_header
    _
  $region3: #{actor_forward.1} parent=0 // loop_header
    %s13 = sphi 0, %s17
    %p14 = scmp.ge.s32.totalorder %s13, 4
    %s23 = sphi 0, %s25
    %s26 = sphi 0, %s23
    %s27 = sphi 0, %s26
    %s43 = sphi 0, %s27
    %s47 = sphi 0, %s47
    %s49 = sphi 0, %s47
    %s50 = sphi 0, %s49
    %s64 = sphi 0, %s50
    %s68 = sphi 0, %s68
    %s70 = sphi 0, %s68
    %s71 = sphi 0, %s70
    %s85 = sphi 0, %s71
    %s89 = sphi 0, %s89
    %s91 = sphi 0, %s89
    %s92 = sphi 0, %s91
    %s106 = sphi 0, %s92
    %s110 = sphi 0, %s110
    %s112 = sphi 0, %s110
    %s113 = sphi 0, %s112
    %s127 = sphi 0, %s113
    %s131 = sphi 0, %s131
    %s133 = sphi 0, %s131
    %s134 = sphi 0, %s133
    %s148 = sphi 0, %s134
    %s152 = sphi 0, %s152
    %s154 = sphi 0, %s152
    %s155 = sphi 0, %s154
    %s169 = sphi 0, %s155
    %s175 = sphi 0, %s177
    %s178 = sphi 0, %s175
    %s179 = sphi 0, %s178
    %s195 = sphi 0, %s179
  $region4: #{actor_forward.1} parent=0 // loop_header_branch
    %16 = sbr.rel (%p14) target = $region8
  $region5: #{actor_forward.1} parent=0 // loop_body
    %s18 = ssub.s32 %s13, 1
    %s19 = ssub.s32 %s13, 2
    %s20 = sadd.s32 %s13, 1
    %s21 = ssub.s32 %s13, %s20
    %p22 = scmp.eq.s32.totalorder %s21, 0
    %s24 = sadd.s32 %s23, 1
    %s25 = scalar_select %p22, %s23, %s24
    %p28 = pneg %p22
    %p29 = scmp.eq.s32.totalorder %s13, 1
    %p30 = por %p28, %p29
    %p31 = scmp.ne.s32.totalorder %s23, %s26
    %p32 = scmp.eq.s32.totalorder %s13, 0
    %p33 = por %p31, %p32
    %p34 = scmp.ne.s32.totalorder %s23, %s26
    %p35 = scmp.eq.s32.totalorder %s18, 1
    %p36 = por %p34, %p35
    %p37 = scmp.ne.s32.totalorder %s26, %s27
    %p38 = scmp.eq.s32.totalorder %s18, 0
    %p39 = por %p37, %p38
    %p40 = scmp.ne.s32.totalorder %s26, %s27
    %p41 = scmp.eq.s32.totalorder %s19, 1
    %p42 = por %p40, %p41
    %p44 = scmp.ne.s32.totalorder %s27, %s43
    %p45 = scmp.eq.s32.totalorder %s19, 0
    %p46 = por %p44, %p45
    %s48 = sadd.s32 %s47, 1
    %p51 = scmp.eq.s32.totalorder %s13, 1
    %p52 = scmp.ne.s32.totalorder %s47, %s49
    %p53 = scmp.eq.s32.totalorder %s13, 0
    %p54 = por %p52, %p53
    %p55 = scmp.ne.s32.totalorder %s47, %s49
    %p56 = scmp.eq.s32.totalorder %s18, 1
    %p57 = por %p55, %p56
    %p58 = scmp.ne.s32.totalorder %s49, %s50
    %p59 = scmp.eq.s32.totalorder %s18, 0
    %p60 = por %p58, %p59
    %p61 = scmp.ne.s32.totalorder %s49, %s50
    %p62 = scmp.eq.s32.totalorder %s19, 1
    %p63 = por %p61, %p62
    %p65 = scmp.ne.s32.totalorder %s50, %s64
    %p66 = scmp.eq.s32.totalorder %s19, 0
    %p67 = por %p65, %p66
    %s69 = sadd.s32 %s68, 1
    %p72 = scmp.eq.s32.totalorder %s13, 1
    %p73 = scmp.ne.s32.totalorder %s68, %s70
    %p74 = scmp.eq.s32.totalorder %s13, 0
    %p75 = por %p73, %p74
    %p76 = scmp.ne.s32.totalorder %s68, %s70
    %p77 = scmp.eq.s32.totalorder %s18, 1
    %p78 = por %p76, %p77
    %p79 = scmp.ne.s32.totalorder %s70, %s71
    %p80 = scmp.eq.s32.totalorder %s18, 0
    %p81 = por %p79, %p80
    %p82 = scmp.ne.s32.totalorder %s70, %s71
    %p83 = scmp.eq.s32.totalorder %s19, 1
    %p84 = por %p82, %p83
    %p86 = scmp.ne.s32.totalorder %s71, %s85
    %p87 = scmp.eq.s32.totalorder %s19, 0
    %p88 = por %p86, %p87
    %s90 = sadd.s32 %s89, 1
    %p93 = scmp.eq.s32.totalorder %s13, 1
    %p94 = scmp.ne.s32.totalorder %s89, %s91
    %p95 = scmp.eq.s32.totalorder %s13, 0
    %p96 = por %p94, %p95
    %p97 = scmp.ne.s32.totalorder %s89, %s91
    %p98 = scmp.eq.s32.totalorder %s18, 1
    %p99 = por %p97, %p98
    %p100 = scmp.ne.s32.totalorder %s91, %s92
    %p101 = scmp.eq.s32.totalorder %s18, 0
    %p102 = por %p100, %p101
    %p103 = scmp.ne.s32.totalorder %s91, %s92
    %p104 = scmp.eq.s32.totalorder %s19, 1
    %p105 = por %p103, %p104
    %p107 = scmp.ne.s32.totalorder %s92, %s106
    %p108 = scmp.eq.s32.totalorder %s19, 0
    %p109 = por %p107, %p108
    %s111 = sadd.s32 %s110, 1
    %p114 = scmp.eq.s32.totalorder %s13, 1
    %p115 = scmp.ne.s32.totalorder %s110, %s112
    %p116 = scmp.eq.s32.totalorder %s13, 0
    %p117 = por %p115, %p116
    %p118 = scmp.ne.s32.totalorder %s110, %s112
    %p119 = scmp.eq.s32.totalorder %s18, 1
    %p120 = por %p118, %p119
    %p121 = scmp.ne.s32.totalorder %s112, %s113
    %p122 = scmp.eq.s32.totalorder %s18, 0
    %p123 = por %p121, %p122
    %p124 = scmp.ne.s32.totalorder %s112, %s113
    %p125 = scmp.eq.s32.totalorder %s19, 1
    %p126 = por %p124, %p125
    %p128 = scmp.ne.s32.totalorder %s113, %s127
    %p129 = scmp.eq.s32.totalorder %s19, 0
    %p130 = por %p128, %p129
    %s132 = sadd.s32 %s131, 1
    %p135 = scmp.eq.s32.totalorder %s13, 1
    %p136 = scmp.ne.s32.totalorder %s131, %s133
    %p137 = scmp.eq.s32.totalorder %s13, 0
    %p138 = por %p136, %p137
    %p139 = scmp.ne.s32.totalorder %s131, %s133
    %p140 = scmp.eq.s32.totalorder %s18, 1
    %p141 = por %p139, %p140
    %p142 = scmp.ne.s32.totalorder %s133, %s134
    %p143 = scmp.eq.s32.totalorder %s18, 0
    %p144 = por %p142, %p143
    %p145 = scmp.ne.s32.totalorder %s133, %s134
    %p146 = scmp.eq.s32.totalorder %s19, 1
    %p147 = por %p145, %p146
    %p149 = scmp.ne.s32.totalorder %s134, %s148
    %p150 = scmp.eq.s32.totalorder %s19, 0
    %p151 = por %p149, %p150
    %s153 = sadd.s32 %s152, 1
    %p156 = scmp.eq.s32.totalorder %s13, 1
    %p157 = scmp.ne.s32.totalorder %s152, %s154
    %p158 = scmp.eq.s32.totalorder %s13, 0
    %p159 = por %p157, %p158
    %p160 = scmp.ne.s32.totalorder %s152, %s154
    %p161 = scmp.eq.s32.totalorder %s18, 1
    %p162 = por %p160, %p161
    %p163 = scmp.ne.s32.totalorder %s154, %s155
    %p164 = scmp.eq.s32.totalorder %s18, 0
    %p165 = por %p163, %p164
    %p166 = scmp.ne.s32.totalorder %s154, %s155
    %p167 = scmp.eq.s32.totalorder %s19, 1
    %p168 = por %p166, %p167
    %p170 = scmp.ne.s32.totalorder %s155, %s169
    %p171 = scmp.eq.s32.totalorder %s19, 0
    %p172 = por %p170, %p171
    %s173 = ssub.s32 %s13, %s20
    %p174 = scmp.eq.s32.totalorder %s173, 0
    %s176 = sadd.s32 %s175, 1
    %s177 = scalar_select %p174, %s175, %s176
    %p180 = pneg %p174
    %p181 = scmp.eq.s32.totalorder %s13, 1
    %p182 = por %p180, %p181
    %p183 = scmp.ne.s32.totalorder %s175, %s178
    %p184 = scmp.eq.s32.totalorder %s13, 0
    %p185 = por %p183, %p184
    %p186 = scmp.ne.s32.totalorder %s175, %s178
    %p187 = scmp.eq.s32.totalorder %s18, 1
    %p188 = por %p186, %p187
    %p189 = scmp.ne.s32.totalorder %s178, %s179
    %p190 = scmp.eq.s32.totalorder %s18, 0
    %p191 = por %p189, %p190
    %p192 = scmp.ne.s32.totalorder %s178, %s179
    %p193 = scmp.eq.s32.totalorder %s19, 1
    %p194 = por %p192, %p193
    %p196 = scmp.ne.s32.totalorder %s179, %s195
    %p197 = scmp.eq.s32.totalorder %s19, 0
    %p198 = por %p196, %p197
    %p199 = scmp.le.s32.totalorder 1, %s13
    %p200 = scmp.lt.s32.totalorder %s13, 3
    %p201 = pnand %p199, %p200
    %p202 = pneg %p201
    // Predicated region
    $region9: #{actor_forward.1} parent=5 // pred_check
      _
    $region10: #{actor_forward.1} parent=5 // pred_check_branch
      %204 = sbr.rel (%p201) target = $region12
    $region11: #{actor_forward.1} parent=5 // pred_region
      %s205 = ssub.s32 %s13, 1
      // Predicated region
      $region13: #{actor_forward.1} parent=11 // pred_check
        %p206 = pneg %p60
      $region14: #{actor_forward.1} parent=11 // pred_check_branch
        %208 = sbr.rel (%p206) target = $region16
      $region15: #{actor_forward.1} parent=11 // pred_region
        _
      $region16: #{actor_forward.1} parent=11 // pred_fallthru
        _
      // Predicated region
      $region17: #{actor_forward.1} parent=11 // pred_check
        %p209 = pneg %p81
      $region18: #{actor_forward.1} parent=11 // pred_check_branch
        %211 = sbr.rel (%p209) target = $region20
      $region19: #{actor_forward.1} parent=11 // pred_region
        _
      $region20: #{actor_forward.1} parent=11 // pred_fallthru
        _
      // Predicated region
      $region21: #{actor_forward.1} parent=11 // pred_check
        %p212 = pneg %p102
      $region22: #{actor_forward.1} parent=11 // pred_check_branch
        %214 = sbr.rel (%p212) target = $region24
      $region23: #{actor_forward.1} parent=11 // pred_region
        _
      $region24: #{actor_forward.1} parent=11 // pred_fallthru
        _
      // Predicated region
      $region25: #{actor_forward.1} parent=11 // pred_check
        %p215 = pneg %p123
      $region26: #{actor_forward.1} parent=11 // pred_check_branch
        %217 = sbr.rel (%p215) target = $region28
      $region27: #{actor_forward.1} parent=11 // pred_region
        _
      $region28: #{actor_forward.1} parent=11 // pred_fallthru
        _
      // Predicated region
      $region29: #{actor_forward.1} parent=11 // pred_check
        %p218 = pneg %p144
      $region30: #{actor_forward.1} parent=11 // pred_check_branch
        %220 = sbr.rel (%p218) target = $region32
      $region31: #{actor_forward.1} parent=11 // pred_region
        _
      $region32: #{actor_forward.1} parent=11 // pred_fallthru
        _
      // Predicated region
      $region33: #{actor_forward.1} parent=11 // pred_check
        %p221 = pneg %p165
      $region34: #{actor_forward.1} parent=11 // pred_check_branch
        %223 = sbr.rel (%p221) target = $region36
      $region35: #{actor_forward.1} parent=11 // pred_region
        _
      $region36: #{actor_forward.1} parent=11 // pred_fallthru
        _
    $region12: #{actor_forward.1} parent=5 // pred_fallthru
      _
    %p224 = scmp.lt.s32.totalorder %s13, 2
    // Predicated region
    $region37: #{actor_forward.1} parent=5 // pred_check
      %p225 = pneg %p224
    $region38: #{actor_forward.1} parent=5 // pred_check_branch
      %227 = sbr.rel (%p225) target = $region40
    $region39: #{actor_forward.1} parent=5 // pred_region
      // Predicated region
      $region41: #{actor_forward.1} parent=39 // pred_check
        %p228 = pneg %p33
      $region42: #{actor_forward.1} parent=39 // pred_check_branch
        %230 = sbr.rel (%p228) target = $region44
      $region43: #{actor_forward.1} parent=39 // pred_region
        %s231 = smul.u32 4, %s13
        %p232 = scmp.lt.s32.totalorder %s231, 7
        %s233 = scalar_select %p232, %s231, 7
        %s234 = smul.addr %s233, 8
        %s235 = scalar_lea.vmem %s0, %s234
        %s236 = smul.u32 4, %s13
      $region44: #{actor_forward.1} parent=39 // pred_fallthru
        _
    $region40: #{actor_forward.1} parent=5 // pred_fallthru
      _
    %p237 = scmp.le.s32.totalorder 1, %s13
    %p238 = scmp.lt.s32.totalorder %s13, 3
    %p239 = pnand %p237, %p238
    %p240 = pneg %p239
    // Predicated region
    $region45: #{actor_forward.1} parent=5 // pred_check
      _
    $region46: #{actor_forward.1} parent=5 // pred_check_branch
      %242 = sbr.rel (%p239) target = $region48
    $region47: #{actor_forward.1} parent=5 // pred_region
      %s243 = ssub.s32 %s13, 1
      %s244 = smul.u32 4, %s18
      %p245 = scmp.lt.s32.totalorder %s244, 7
      %s246 = scalar_select %p245, %s244, 7
      %s247 = smul.addr %s246, 8
      %s248 = scalar_lea.vmem %s0, %s247
      %p249 = pneg %p39
      %p250 = pneg %p36
      %p251 = pneg %p60
      %p252 = pneg %p57
      %p253 = pneg %p81
      %p254 = pneg %p78
      %p255 = pneg %p102
      %p256 = pneg %p99
      %p257 = pneg %p123
      %p258 = pneg %p120
      %p259 = pneg %p144
      %p260 = pneg %p141
      %p261 = pneg %p165
      %p262 = pneg %p162
      %p263 = pneg %p191
      %p264 = pneg %p188
      %s265 = smul.u32 4, %s18
      %p266 = scmp.lt.s32.totalorder %s265, 7
      %s267 = scalar_select %p266, %s265, 7
      %s268 = smul.addr %s267, 8
      %s269 = scalar_lea.vmem %s7, %s268
      %s270 = smul.u32 4, %s18
      %p271 = scmp.lt.s32.totalorder %s270, 7
      %s272 = scalar_select %p271, %s270, 7
      %s273 = smul.addr %s272, 8
      %s274 = scalar_lea.vmem %s0, %s273
      %s275 = smul.u32 4, %s18
      %s276 = smul.u32 4, %s18
      %p277 = scmp.lt.s32.totalorder %s276, 7
      %s278 = scalar_select %p277, %s276, 7
      %s279 = smul.addr %s278, 8
      %s280 = scalar_lea.vmem %s7, %s279
      %s281 = smul.u32 4, %s18
      %v283 = vld [vmem:[%s1] sm:$0xf]
      %v284 = vld [vmem:[%s1 + $0x4] sm:$0xf]
      %v285 = vld [vmem:[%s274] sm:$0xff]
      %v286 = vld [vmem:[%s274 + $0x8] sm:$0xff]
      %v287 = vld [vmem:[%s274 + $0x10] sm:$0xff]
      %v288 = vld [vmem:[%s274 + $0x18] sm:$0xff]
      %v289 = vpack.c.bf16 %v286, %v285
      %v290 = vpack.c.bf16 %v288, %v287
      %v291 = vld [vmem:[%s2] sm:$0x1]
      %v293 = vperm.slane %v291, 0
      %v297 = vunpack.c.l.b16 %v283
      %v298 = vunpack.c.l.b16 %v284
      %v299 = vpack.c.b16 %v298, %v297
      %vm301 = vcmask 130048
      %v303 = vsel %vm301, %v289, 0
      %v306 = vsel %vm301, %v290, 0
      %308 = vmatpush.bf16.msra.mxu0 0
      %309 = vmatpush.bf16.msra.mxu0 0
      %310 = vmatpush.bf16.msra.mxu0 0
      %311 = vmatpush.bf16.msra.mxu0 0
      %312 = vmatpush.bf16.msra.mxu0 0
      %313 = vmatpush.bf16.msra.mxu0 0
      %314 = vmatpush.bf16.msra.mxu0 0
      %315 = vmatpush.bf16.msra.mxu0 %v299
      %316 = vmatmul.bf16.gmra.mxu0 %v303
      %v317 = vpop.f32.mrf.mxu0
      %v318 = vadd.f32 %v293, %v317
      %v319 = vpop.f32.mrf.mxu0
      %v320 = vadd.f32 %v293, %v319
      %321 = vmatmul.bf16.gmra.mxu0 %v306
      %v322 = vpop.f32.mrf.mxu0
      %v323 = vadd.f32 %v293, %v322
      %v324 = vpop.f32.mrf.mxu0
      %v325 = vadd.f32 %v293, %v324
      %326 = vdwg.mxu0
      %v327 = vpack.c.bf16 %v320, %v318
      %v328 = vpack.c.bf16 %v325, %v323
      %v329 = vunpack.c.l.bf16 %v327
      %v330 = vunpack.c.h.bf16 %v327
      %v331 = vunpack.c.l.bf16 %v328
      %v332 = vunpack.c.h.bf16 %v328
      %v333 = vtanh.pop %v329
      %v334 = vtanh.pop %v330
      %v335 = vtanh.pop %v331
      %v336 = vtanh.pop %v332
      %v337 = vpack.c.bf16 %v334, %v333
      %v338 = vpack.c.bf16 %v336, %v335
      %v339 = vld [vmem:[%s3] sm:$0xf]
      %v340 = vld [vmem:[%s3 + $0x4] sm:$0xf]
      %v341 = vld [vmem:[%s3 + $0x8] sm:$0xf]
      %v342 = vld [vmem:[%s3 + $0xc] sm:$0xf]
      %v343 = vld [vmem:[%s3 + $0x10] sm:$0xf]
      %v344 = vld [vmem:[%s3 + $0x14] sm:$0xf]
      %v345 = vld [vmem:[%s3 + $0x18] sm:$0xf]
      %v346 = vld [vmem:[%s3 + $0x1c] sm:$0xf]
      %v347 = vld [vmem:[%s3 + $0x20] sm:$0xf]
      %v348 = vld [vmem:[%s3 + $0x24] sm:$0xf]
      %v349 = vld [vmem:[%s3 + $0x28] sm:$0xf]
      %v350 = vld [vmem:[%s3 + $0x2c] sm:$0xf]
      %v351 = vld [vmem:[%s3 + $0x30] sm:$0xf]
      %v352 = vld [vmem:[%s3 + $0x34] sm:$0xf]
      %v353 = vld [vmem:[%s3 + $0x38] sm:$0xf]
      %v354 = vld [vmem:[%s3 + $0x3c] sm:$0xf]
      %v355 = vld [vmem:[%s4] sm:$0x1]
      %v357 = vperm.slane %v355, 0
      %v375 = vunpack.c.l.b16 %v339
      %v376 = vunpack.c.l.b16 %v340
      %v377 = vunpack.c.l.b16 %v341
      %v378 = vunpack.c.l.b16 %v342
      %v379 = vunpack.c.l.b16 %v343
      %v380 = vunpack.c.l.b16 %v344
      %v381 = vunpack.c.l.b16 %v345
      %v382 = vunpack.c.l.b16 %v346
      %v383 = vunpack.c.l.b16 %v347
      %v384 = vunpack.c.l.b16 %v348
      %v385 = vunpack.c.l.b16 %v349
      %v386 = vunpack.c.l.b16 %v350
      %v387 = vunpack.c.l.b16 %v351
      %v388 = vunpack.c.l.b16 %v352
      %v389 = vunpack.c.l.b16 %v353
      %v390 = vunpack.c.l.b16 %v354
      %v391 = vpack.c.b16 %v376, %v375
      %v392 = vpack.c.b16 %v378, %v377
      %v393 = vpack.c.b16 %v380, %v379
      %v394 = vpack.c.b16 %v382, %v381
      %v395 = vpack.c.b16 %v384, %v383
      %v396 = vpack.c.b16 %v386, %v385
      %v397 = vpack.c.b16 %v388, %v387
      %v398 = vpack.c.b16 %v390, %v389
      %407 = vmatpush.bf16.msra.mxu0 %v398
      %408 = vmatpush.bf16.msra.mxu0 %v397
      %409 = vmatpush.bf16.msra.mxu0 %v396
      %410 = vmatpush.bf16.msra.mxu0 %v395
      %411 = vmatpush.bf16.msra.mxu0 %v394
      %412 = vmatpush.bf16.msra.mxu0 %v393
      %413 = vmatpush.bf16.msra.mxu0 %v392
      %414 = vmatpush.bf16.msra.mxu0 %v391
      %415 = vmatmul.bf16.gmra.mxu0 %v337
      %v416 = vpop.f32.mrf.mxu0
      %v417 = vadd.f32 %v357, %v416
      %v418 = vpop.f32.mrf.mxu0
      %v419 = vadd.f32 %v357, %v418
      %420 = vmatmul.bf16.gmra.mxu0 %v338
      %v421 = vpop.f32.mrf.mxu0
      %v422 = vadd.f32 %v357, %v421
      %v423 = vpop.f32.mrf.mxu0
      %v424 = vadd.f32 %v357, %v423
      %425 = vdwg.mxu0
      %v426 = vpack.c.bf16 %v419, %v417
      %v427 = vpack.c.bf16 %v424, %v422
      %v428 = vunpack.c.l.bf16 %v426
      %v429 = vunpack.c.h.bf16 %v426
      %v430 = vunpack.c.l.bf16 %v427
      %v431 = vunpack.c.h.bf16 %v427
      %v432 = vtanh.pop %v428
      %v433 = vtanh.pop %v429
      %v434 = vtanh.pop %v430
      %v435 = vtanh.pop %v431
      %v436 = vpack.c.bf16 %v433, %v432
      %v437 = vpack.c.bf16 %v435, %v434
      %v438 = vld [vmem:[%s5] sm:$0xf]
      %v439 = vld [vmem:[%s5 + $0x4] sm:$0xf]
      %v440 = vld [vmem:[%s5 + $0x8] sm:$0xf]
      %v441 = vld [vmem:[%s5 + $0xc] sm:$0xf]
      %v442 = vld [vmem:[%s5 + $0x10] sm:$0xf]
      %v443 = vld [vmem:[%s5 + $0x14] sm:$0xf]
      %v444 = vld [vmem:[%s5 + $0x18] sm:$0xf]
      %v445 = vld [vmem:[%s5 + $0x1c] sm:$0xf]
      %v446 = vld [vmem:[%s5 + $0x20] sm:$0xf]
      %v447 = vld [vmem:[%s5 + $0x24] sm:$0xf]
      %v448 = vld [vmem:[%s5 + $0x28] sm:$0xf]
      %v449 = vld [vmem:[%s5 + $0x2c] sm:$0xf]
      %v450 = vld [vmem:[%s5 + $0x30] sm:$0xf]
      %v451 = vld [vmem:[%s5 + $0x34] sm:$0xf]
      %v452 = vld [vmem:[%s5 + $0x38] sm:$0xf]
      %v453 = vld [vmem:[%s5 + $0x3c] sm:$0xf]
      %v454 = vld [vmem:[%s6] sm:$0x1]
      %v456 = vperm.slane %v454, 0
      %v474 = vunpack.c.l.b16 %v438
      %v475 = vunpack.c.l.b16 %v439
      %v476 = vunpack.c.l.b16 %v440
      %v477 = vunpack.c.l.b16 %v441
      %v478 = vunpack.c.l.b16 %v442
      %v479 = vunpack.c.l.b16 %v443
      %v480 = vunpack.c.l.b16 %v444
      %v481 = vunpack.c.l.b16 %v445
      %v482 = vunpack.c.l.b16 %v446
      %v483 = vunpack.c.l.b16 %v447
      %v484 = vunpack.c.l.b16 %v448
      %v485 = vunpack.c.l.b16 %v449
      %v486 = vunpack.c.l.b16 %v450
      %v487 = vunpack.c.l.b16 %v451
      %v488 = vunpack.c.l.b16 %v452
      %v489 = vunpack.c.l.b16 %v453
      %v490 = vpack.c.b16 %v475, %v474
      %v491 = vpack.c.b16 %v477, %v476
      %v492 = vpack.c.b16 %v479, %v478
      %v493 = vpack.c.b16 %v481, %v480
      %v494 = vpack.c.b16 %v483, %v482
      %v495 = vpack.c.b16 %v485, %v484
      %v496 = vpack.c.b16 %v487, %v486
      %v497 = vpack.c.b16 %v489, %v488
      %506 = vmatpush.bf16.msra.mxu0 %v497
      %507 = vmatpush.bf16.msra.mxu0 %v496
      %508 = vmatpush.bf16.msra.mxu0 %v495
      %509 = vmatpush.bf16.msra.mxu0 %v494
      %510 = vmatpush.bf16.msra.mxu0 %v493
      %511 = vmatpush.bf16.msra.mxu0 %v492
      %512 = vmatpush.bf16.msra.mxu0 %v491
      %513 = vmatpush.bf16.msra.mxu0 %v490
      %514 = vmatmul.bf16.gmra.mxu0 %v436
      %v515 = vpop.f32.mrf.mxu0
      %v516 = vadd.f32 %v456, %v515
      %v517 = vpop.f32.mrf.mxu0
      %v518 = vadd.f32 %v456, %v517
      %519 = vmatmul.bf16.gmra.mxu0 %v437
      %v520 = vpop.f32.mrf.mxu0
      %v521 = vadd.f32 %v456, %v520
      %v522 = vpop.f32.mrf.mxu0
      %v523 = vadd.f32 %v456, %v522
      %524 = vdwg.mxu0
      %vm525 = vcmask 64512
      %v526 = vsel %vm525, %v516, -inf
      %527 = vmax.xlane.f32.xlu0 %v526
      %v528 = vpop.xlane.xlu0 %527
      %v529 = vsel %vm525, %v518, -inf
      %530 = vmax.xlane.f32.xlu0 %v529
      %v531 = vpop.xlane.xlu0 %530
      %v532 = vsel %vm525, %v521, -inf
      %533 = vmax.xlane.f32.xlu0 %v532
      %v534 = vpop.xlane.xlu0 %533
      %v535 = vsel %vm525, %v523, -inf
      %536 = vmax.xlane.f32.xlu0 %v535
      %v537 = vpop.xlane.xlu0 %536
      %v538 = vsub.f32 %v516, %v528
      %v539 = vsub.f32 %v518, %v531
      %v540 = vsub.f32 %v521, %v534
      %v541 = vsub.f32 %v523, %v537
      %v542 = vmul.f32 %v538, 1.442695
      %v543 = vpow.pop %v542
      %v544 = vmul.f32 %v539, 1.442695
      %v545 = vpow.pop %v544
      %v546 = vmul.f32 %v540, 1.442695
      %v547 = vpow.pop %v546
      %v548 = vmul.f32 %v541, 1.442695
      %v549 = vpow.pop %v548
      %v550 = vsel %vm525, %v543, 0.0
      %551 = vadd.xlane.f32.xlu0 %v550
      %v552 = vpop.xlane.xlu0 %551
      %v553 = vsel %vm525, %v545, 0.0
      %554 = vadd.xlane.f32.xlu0 %v553
      %v555 = vpop.xlane.xlu0 %554
      %v556 = vsel %vm525, %v547, 0.0
      %557 = vadd.xlane.f32.xlu0 %v556
      %v558 = vpop.xlane.xlu0 %557
      %v559 = vsel %vm525, %v549, 0.0
      %560 = vadd.xlane.f32.xlu0 %v559
      %v561 = vpop.xlane.xlu0 %560
      %v562 = vrcp.pop %v552
      %v563 = vmul.f32 %v552, %v562
      %v564 = vsub.f32 1.0, %v563
      %v565 = vmul.f32 %v562, %v564
      %v566 = vadd.f32 %v562, %v565
      %vm567 = vweird.f32 %v552
      %vm568 = vweird.f32 %v562
      %vm569 = vmor %vm567, %vm568
      %v570 = vsel %vm569, %v562, %v566
      %v571 = vand.u32 2147483647, %v552
      %vm572 = vcmp.eq.f32.partialorder %v571, 8.507059e+37
      %v573 = vand.u32 %v552, 2147483648
      %v574 = vor.u32 1.1754944e-38, %v573
      %v575 = vsel %vm572, %v574, %v570
      %v576 = vrcp.pop %v555
      %v577 = vmul.f32 %v555, %v576
      %v578 = vsub.f32 1.0, %v577
      %v579 = vmul.f32 %v576, %v578
      %v580 = vadd.f32 %v576, %v579
      %vm581 = vweird.f32 %v555
      %vm582 = vweird.f32 %v576
      %vm583 = vmor %vm581, %vm582
      %v584 = vsel %vm583, %v576, %v580
      %v585 = vand.u32 2147483647, %v555
      %vm586 = vcmp.eq.f32.partialorder %v585, 8.507059e+37
      %v587 = vand.u32 %v555, 2147483648
      %v588 = vor.u32 1.1754944e-38, %v587
      %v589 = vsel %vm586, %v588, %v584
      %v590 = vrcp.pop %v558
      %v591 = vmul.f32 %v558, %v590
      %v592 = vsub.f32 1.0, %v591
      %v593 = vmul.f32 %v590, %v592
      %v594 = vadd.f32 %v590, %v593
      %vm595 = vweird.f32 %v558
      %vm596 = vweird.f32 %v590
      %vm597 = vmor %vm595, %vm596
      %v598 = vsel %vm597, %v590, %v594
      %v599 = vand.u32 2147483647, %v558
      %vm600 = vcmp.eq.f32.partialorder %v599, 8.507059e+37
      %v601 = vand.u32 %v558, 2147483648
      %v602 = vor.u32 1.1754944e-38, %v601
      %v603 = vsel %vm600, %v602, %v598
      %v604 = vrcp.pop %v561
      %v605 = vmul.f32 %v561, %v604
      %v606 = vsub.f32 1.0, %v605
      %v607 = vmul.f32 %v604, %v606
      %v608 = vadd.f32 %v604, %v607
      %vm609 = vweird.f32 %v561
      %vm610 = vweird.f32 %v604
      %vm611 = vmor %vm609, %vm610
      %v612 = vsel %vm611, %v604, %v608
      %v613 = vand.u32 2147483647, %v561
      %vm614 = vcmp.eq.f32.partialorder %v613, 8.507059e+37
      %v615 = vand.u32 %v561, 2147483648
      %v616 = vor.u32 1.1754944e-38, %v615
      %v617 = vsel %vm614, %v616, %v612
      %v618 = vmul.f32 %v543, %v575
      %v619 = vmul.f32 %v545, %v589
      %v620 = vmul.f32 %v547, %v603
      %v621 = vmul.f32 %v549, %v617
      %622 = vst.msk [vmem:[%s280] sm:$0xff] %vm525, %v618
      %623 = vst.msk [vmem:[%s280 + $0x8] sm:$0xff] %vm525, %v619
      %624 = vst.msk [vmem:[%s280 + $0x10] sm:$0xff] %vm525, %v620
      %625 = vst.msk [vmem:[%s280 + $0x18] sm:$0xff] %vm525, %v621
      %s626 = smul.u32 4, %s18
      %p627 = scmp.lt.s32.totalorder %s626, 7
      %s628 = scalar_select %p627, %s626, 7
      %s629 = smul.addr %s628, 8
      %s630 = scalar_lea.vmem %s7, %s629
      // Predicated region
      $region49: #{actor_forward.1} parent=47 // pred_check
        %p631 = pneg %p188
      $region50: #{actor_forward.1} parent=47 // pred_check_branch
        %633 = sbr.rel (%p631) target = $region52
      $region51: #{actor_forward.1} parent=47 // pred_region
        %s634 = smul.u32 4, %s18
      $region52: #{actor_forward.1} parent=47 // pred_fallthru
        _
    $region48: #{actor_forward.1} parent=5 // pred_fallthru
      _
    %p635 = scmp.le.s32.totalorder 2, %s13
    // Predicated region
    $region53: #{actor_forward.1} parent=5 // pred_check
      %p636 = pneg %p635
    $region54: #{actor_forward.1} parent=5 // pred_check_branch
      %638 = sbr.rel (%p636) target = $region56
    $region55: #{actor_forward.1} parent=5 // pred_region
      %s639 = ssub.s32 %s13, 2
      // Predicated region
      $region57: #{actor_forward.1} parent=55 // pred_check
        %p640 = pneg %p194
      $region58: #{actor_forward.1} parent=55 // pred_check_branch
        %642 = sbr.rel (%p640) target = $region60
      $region59: #{actor_forward.1} parent=55 // pred_region
        %s643 = smul.u32 4, %s19
        %p644 = scmp.lt.s32.totalorder %s643, 7
        %s645 = scalar_select %p644, %s643, 7
        %s646 = smul.addr %s645, 8
        %s647 = scalar_lea.vmem %s7, %s646
      $region60: #{actor_forward.1} parent=55 // pred_fallthru
        _
    $region56: #{actor_forward.1} parent=5 // pred_fallthru
      _
  $region6: #{actor_forward.1} parent=0 // loop_footer
    %s17 = sadd.s32 1, %s13
  $region7: #{actor_forward.1} parent=0 // loop_footer_branch
    %12 = sbr.rel target = $region3
  $region8: #{actor_forward.1} parent=0 // loop_exit
    _

</llo_original>
